<compile_context>
chip_gen: v7x
topology: tpu7x:2x2x1
jax: 0.10.0
libtpu: 0.0.40
codegen_flags: <defaults>
</compile_context>

<pallas_src>
import functools

import jax
import jax.numpy as jnp
from jax import lax
from jax.experimental import pallas as pl
from jax.experimental.pallas import tpu as pltpu


def _round_up(n, m):
    return ((n + m - 1) // m) * m


def cnn_kernel(x_ref, w_ref, b_ref, o_ref, *, l_out, c_pad):
    """x_ref: (bb, c_in*L)           bf16  flattened word block
       w_ref: (c_in*L, l_out*c_pad)  bf16  Toeplitz conv weight (zero-padded)
       b_ref: (1, c_pad)             f32   zero-padded bias
       o_ref: (bb, c_pad)            f32   lane-dense output block."""
    # One lane-dense MXU matmul per grid step: conv for all output times at once.
    y = jnp.dot(x_ref[...], w_ref[...],
                preferred_element_type=jnp.float32)          # (bb, l_out*c_pad)

    # Max over time via a maximum tree on 128-lane-aligned static slices
    # (keeps everything lane-dense; no lane->sublane relayout).
    m = y[:, 0:c_pad]
    for t in range(1, l_out):
        m = jnp.maximum(m, y[:, t * c_pad:(t + 1) * c_pad])

    # bias + ReLU hoisted past the max (exact: ReLU monotone, bias time-invariant).
    o_ref[...] = jnp.maximum(m + b_ref[...], 0.0).astype(o_ref.dtype)


def cnn_forward(x, weight, bias, *, kernel_size=5, pad_size=1, block_b=1024):
    """x: (B, c_in, L) f32, weight: (c_out, c_in, K) f32, bias: (c_out,) f32
       -> (B, c_out) f32, matching nn.Conv1d + relu + max-over-time."""
    B, c_in, L = x.shape
    c_out = weight.shape[0]
    l_out = L + 2 * pad_size - kernel_size + 1
    assert l_out >= 1, "sequence too short for this kernel/padding"
    c_pad = _round_up(c_out, 128)

    # ---- wrapper-side layout plumbing (tiny tensors, done once) ----
    # Toeplitz / "im2col as weight" matrix:
    #   W_t[c*L + l, t*c_pad + o] = weight[o, c, l - t + pad]   (0 outside the
    #   band, which also encodes Conv1d's zero padding); columns o >= c_out
    #   are all-zero so the padded output channels are exactly 0.
    w_kco = jnp.transpose(weight, (2, 1, 0))                   # (K, c_in, c_out)
    W_t = jnp.zeros((c_in * L, l_out * c_pad), jnp.float32)
    rows_c = L * jnp.arange(c_in)                              # (c_in,)
    for t in range(l_out):
        for k in range(kernel_size):
            l = t + k - pad_size
            if 0 <= l < L:
                W_t = W_t.at[rows_c + l,
                             t * c_pad:t * c_pad + c_out].set(w_kco[k])
    W_t = W_t.astype(jnp.bfloat16)

    x_flat = x.reshape(B, c_in * L).astype(jnp.bfloat16)       # no transpose needed
    b_pad = jnp.zeros((1, c_pad), jnp.float32).at[0, :c_out].set(
        bias.astype(jnp.float32))

    # Word-block size: big (amortize per-step overhead), multiple of 8, and
    # >= 2 grid steps when possible so v7x's two TensorCores both get work.
    if B <= block_b:
        bb = min(_round_up(pl.cdiv(B, 2), 8), block_b)
        if bb >= B:
            bb = B                                             # too small to split
    else:
        bb = block_b
    grid = (pl.cdiv(B, bb),)

    kern = functools.partial(cnn_kernel, l_out=l_out, c_pad=c_pad)

    out = pl.pallas_call(
        kern,
        out_shape=jax.ShapeDtypeStruct((B, c_pad), jnp.float32),
        grid=grid,
        in_specs=[
            pl.BlockSpec((bb, c_in * L), lambda i: (i, 0)),
            pl.BlockSpec((c_in * L, l_out * c_pad), lambda i: (0, 0)),
            pl.BlockSpec((1, c_pad), lambda i: (0, 0)),
        ],
        out_specs=pl.BlockSpec((bb, c_pad), lambda i: (i, 0)),
        compiler_params=pltpu.CompilerParams(
            dimension_semantics=("parallel",)),
    )(x_flat, W_t, b_pad)

    return out[:, :c_out]


def cnn_reference(x, weight, bias, *, pad_size=1):
    """Pure-JAX f32 reference mirroring the PyTorch forward."""
    y = lax.conv_general_dilated(
        x, weight, window_strides=(1,), padding=[(pad_size, pad_size)],
        dimension_numbers=('NCH', 'OIH', 'NCH'))
    y = y + bias.reshape(1, -1, 1)
    return jnp.max(jnp.maximum(y, 0.0), axis=2)


if __name__ == "__main__":
    # Small shapes consistent with the module:
    #   char_embed_size=4, word_embed_size=32, kernel_size=5, pad_size=1
    batch, char_embed, word_embed, seq_len = 2, 4, 32, 16
    kernel_size, pad_size = 5, 1

    key = jax.random.PRNGKey(0)
    kx, kw, kb = jax.random.split(key, 3)

    # Deterministic parameter init (PyTorch Conv1d-style uniform bound).
    fan_in = char_embed * kernel_size
    bound = 1.0 / (fan_in ** 0.5)
    weight = jax.random.uniform(
        kw, (word_embed, char_embed, kernel_size), jnp.float32, -bound, bound)
    bias = jax.random.uniform(kb, (word_embed,), jnp.float32, -bound, bound)

    x = jax.random.normal(kx, (batch, char_embed, seq_len), jnp.float32)

    out = cnn_forward(x, weight, bias, kernel_size=kernel_size, pad_size=pad_size)
    out = jax.block_until_ready(out)

    ref = cnn_reference(x, weight, bias, pad_size=pad_size)
    assert out.shape == (batch, word_embed)
    # bf16 matmul operands (f32 accumulation) -> loosened tolerance vs f32 ref.
    assert jnp.allclose(out, ref, atol=3e-2, rtol=3e-2), "mismatch vs reference"

    print("KERNEL_OK")
</pallas_src>

<mosaic_0001>
module attributes {stable_mosaic.version = 11 : i64} {
  func.func @cnn_kernel(%arg0: i32, %arg1: memref<2x64xbf16, #tpu.memory_space<vmem>>, %arg2: memref<64x1792xbf16, #tpu.memory_space<vmem>>, %arg3: memref<1x128xf32, #tpu.memory_space<vmem>>, %arg4: memref<2x128xf32, #tpu.memory_space<vmem>>) attributes {dimension_semantics = [#tpu.dimension_semantics<parallel>], iteration_bounds = array<i64: 1>, scalar_prefetch = 0 : i64, scratch_operands = 0 : i64, tpu.core_type = #tpu.core_type<tc>, window_params = [{transform_indices = @transform_0, window_bounds = array<i64: 2, 64>}, {pipeline_mode = #tpu.pipeline_mode<synchronous>, transform_indices = @transform_1, window_bounds = array<i64: 64, 1792>}, {pipeline_mode = #tpu.pipeline_mode<synchronous>, transform_indices = @transform_2, window_bounds = array<i64: 1, 128>}, {transform_indices = @transform_3, window_bounds = array<i64: 2, 128>}]} {
    %c0 = arith.constant 0 : index
    %c0_0 = arith.constant 0 : index
    %0 = vector.load %arg1[%c0, %c0_0] : memref<2x64xbf16, #tpu.memory_space<vmem>>, vector<2x64xbf16>
    %c0_1 = arith.constant 0 : index
    %c0_2 = arith.constant 0 : index
    %1 = vector.load %arg2[%c0_1, %c0_2] : memref<64x1792xbf16, #tpu.memory_space<vmem>>, vector<64x1792xbf16>
    %cst = arith.constant dense<0.000000e+00> : vector<2x1792xf32>
    %2 = tpu.matmul %0, %1, %cst {dimension_numbers = #tpu.dot_dimension_numbers<[1], [0], [0], [1], [0, 0, 1, 1], [], []>} : vector<2x64xbf16>, vector<64x1792xbf16>, vector<2x1792xf32> -> vector<2x1792xf32>
    %3 = vector.extract_strided_slice %2 {offsets = [0, 0], sizes = [2, 128], strides = [1, 1]} : vector<2x1792xf32> to vector<2x128xf32>
    %4 = vector.extract_strided_slice %2 {offsets = [0, 128], sizes = [2, 128], strides = [1, 1]} : vector<2x1792xf32> to vector<2x128xf32>
    %5 = arith.maximumf %3, %4 : vector<2x128xf32>
    %6 = vector.extract_strided_slice %2 {offsets = [0, 256], sizes = [2, 128], strides = [1, 1]} : vector<2x1792xf32> to vector<2x128xf32>
    %7 = arith.maximumf %5, %6 : vector<2x128xf32>
    %8 = vector.extract_strided_slice %2 {offsets = [0, 384], sizes = [2, 128], strides = [1, 1]} : vector<2x1792xf32> to vector<2x128xf32>
    %9 = arith.maximumf %7, %8 : vector<2x128xf32>
    %10 = vector.extract_strided_slice %2 {offsets = [0, 512], sizes = [2, 128], strides = [1, 1]} : vector<2x1792xf32> to vector<2x128xf32>
    %11 = arith.maximumf %9, %10 : vector<2x128xf32>
    %12 = vector.extract_strided_slice %2 {offsets = [0, 640], sizes = [2, 128], strides = [1, 1]} : vector<2x1792xf32> to vector<2x128xf32>
    %13 = arith.maximumf %11, %12 : vector<2x128xf32>
    %14 = vector.extract_strided_slice %2 {offsets = [0, 768], sizes = [2, 128], strides = [1, 1]} : vector<2x1792xf32> to vector<2x128xf32>
    %15 = arith.maximumf %13, %14 : vector<2x128xf32>
    %16 = vector.extract_strided_slice %2 {offsets = [0, 896], sizes = [2, 128], strides = [1, 1]} : vector<2x1792xf32> to vector<2x128xf32>
    %17 = arith.maximumf %15, %16 : vector<2x128xf32>
    %18 = vector.extract_strided_slice %2 {offsets = [0, 1024], sizes = [2, 128], strides = [1, 1]} : vector<2x1792xf32> to vector<2x128xf32>
    %19 = arith.maximumf %17, %18 : vector<2x128xf32>
    %20 = vector.extract_strided_slice %2 {offsets = [0, 1152], sizes = [2, 128], strides = [1, 1]} : vector<2x1792xf32> to vector<2x128xf32>
    %21 = arith.maximumf %19, %20 : vector<2x128xf32>
    %22 = vector.extract_strided_slice %2 {offsets = [0, 1280], sizes = [2, 128], strides = [1, 1]} : vector<2x1792xf32> to vector<2x128xf32>
    %23 = arith.maximumf %21, %22 : vector<2x128xf32>
    %24 = vector.extract_strided_slice %2 {offsets = [0, 1408], sizes = [2, 128], strides = [1, 1]} : vector<2x1792xf32> to vector<2x128xf32>
    %25 = arith.maximumf %23, %24 : vector<2x128xf32>
    %26 = vector.extract_strided_slice %2 {offsets = [0, 1536], sizes = [2, 128], strides = [1, 1]} : vector<2x1792xf32> to vector<2x128xf32>
    %27 = arith.maximumf %25, %26 : vector<2x128xf32>
    %28 = vector.extract_strided_slice %2 {offsets = [0, 1664], sizes = [2, 128], strides = [1, 1]} : vector<2x1792xf32> to vector<2x128xf32>
    %29 = arith.maximumf %27, %28 : vector<2x128xf32>
    %c0_3 = arith.constant 0 : index
    %c0_4 = arith.constant 0 : index
    %30 = vector.load %arg3[%c0_3, %c0_4] : memref<1x128xf32, #tpu.memory_space<vmem>>, vector<1x128xf32>
    %31 = vector.broadcast %30 : vector<1x128xf32> to vector<2x128xf32>
    %32 = arith.addf %29, %31 : vector<2x128xf32>
    %cst_5 = arith.constant 0.000000e+00 : f32
    %33 = vector.broadcast %cst_5 : f32 to vector<2x128xf32>
    %34 = arith.maximumf %32, %33 : vector<2x128xf32>
    %c0_6 = arith.constant 0 : index
    %c0_7 = arith.constant 0 : index
    %35 = vector.load %arg4[%c0_6, %c0_7] : memref<2x128xf32, #tpu.memory_space<vmem>>, vector<2x128xf32>
    tpu.vector_store %arg4[%c0_6, %c0_7], %34 {strides = array<i32>} : memref<2x128xf32, #tpu.memory_space<vmem>>, vector<2x128xf32>,
    return
  }
  func.func @transform_0(%arg0: i32) -> (i32, i32) {
    %c0_i32 = arith.constant 0 : i32
    %c0_i32_0 = arith.constant 0 : i32
    return %arg0, %c0_i32 : i32, i32
  }
  func.func @transform_1(%arg0: i32) -> (i32, i32) {
    %c0_i32 = arith.constant 0 : i32
    %c0_i32_0 = arith.constant 0 : i32
    %c0_i32_1 = arith.constant 0 : i32
    return %c0_i32, %c0_i32_0 : i32, i32
  }
  func.func @transform_2(%arg0: i32) -> (i32, i32) {
    %c0_i32 = arith.constant 0 : i32
    %c0_i32_0 = arith.constant 0 : i32
    %c0_i32_1 = arith.constant 0 : i32
    return %c0_i32, %c0_i32_0 : i32, i32
  }
  func.func @transform_3(%arg0: i32) -> (i32, i32) {
    %c0_i32 = arith.constant 0 : i32
    %c0_i32_0 = arith.constant 0 : i32
    return %arg0, %c0_i32 : i32, i32
  }
}

</mosaic_0001>

<llo_original>
// kernel: tpu_custom_call.1
$region0: #{tpu_custom_call.1}
  #allocation0 [shape = 'u32[]', space=smem, size = 0x4, offset = 0x4, fixed_abs, tag = 'smem constant byte address 0x4 - core index']
  #allocation1 [shape = 'u32[144,128]{1,0:T(1,128)}', space=vmem, size = 0x12000, scoped, tag = 'internal scratch']
  %s0 = inlined_call_operand.hbm [shape: bf16[2,64], index: 0, kind: input, shape index: {}]
  %s1 = inlined_call_operand.hbm [shape: bf16[64,1792], index: 1, kind: input, shape index: {}]
  %s2 = inlined_call_operand.vmem [shape: f32[1,128], index: 2, kind: input, shape index: {}]
  %s3 = inlined_call_operand.hbm [shape: f32[2,128], index: 3, kind: output, shape index: {}]
  %s4 = sld [smem:[#allocation0]]
  $region30: #{tpu_custom_call.1} parent=0
    _
  %s6 = ssub.s32 1, %s4
  %s7 = scalar_select 0, %s6, %s4
  $region1: #{tpu_custom_call.1} parent=0
    #allocation2 [shape = 'u8[512]{0}', space=vmem, size = 0x400, scoped, tag = 'input window, operand 0, single buffered']
    #allocation3 [shape = 's32[1]{0}', space=sflag, size = 0x4, scoped, tag = 'scoped memory for tpu_custom_call.1']
    #allocation4 [shape = 's32[1]{0}', space=sflag, size = 0x4, scoped, tag = 'scoped memory for tpu_custom_call.1']
    #allocation5 [shape = 'u8[229376]{0}', space=vmem, size = 0x38000, scoped, tag = 'input window, operand 1, single buffered']
    #allocation6 [shape = 's32[1]{0}', space=sflag, size = 0x4, scoped, tag = 'scoped memory for tpu_custom_call.1']
    #allocation7 [shape = 'u8[1024]{0}', space=vmem, size = 0x400, scoped, tag = 'output window, operand 0, single buffered']
    %8 = vsyncpa [#allocation3], 0
    %9 = vsyncpa [#allocation6], 0
    %10 = vsyncpa [#allocation4], 0
    // Predicated region
    $region2: #{tpu_custom_call.1} parent=1 // pred_check
      _
    $region3: #{tpu_custom_call.1} parent=1 // pred_check_branch
      %12 = sbr.rel (0) target = $region5
    $region4: #{tpu_custom_call.1} parent=1 // pred_region
      %s14 = ssub.s32 16, 16
      %15 = vsyncadd [#allocation3], %s14
      %s17 = sshll.u32 [#allocation2], 4
      %s18 = int_to_ptr.vmem [resolvable:$true] %s17
      %20 = dma.hbm_to_vmem [thread:$0]  %s0, 16, %s18, [#allocation3]
    $region5: #{tpu_custom_call.1} parent=1 // pred_fallthru
      _
    // Predicated region
    $region6: #{tpu_custom_call.1} parent=1 // pred_check
      _
    $region7: #{tpu_custom_call.1} parent=1 // pred_check_branch
      %22 = sbr.rel (0) target = $region9
    $region8: #{tpu_custom_call.1} parent=1 // pred_region
      %s24 = ssub.s32 7168, 7168
      %25 = vsyncadd [#allocation6], %s24
      %s26 = sshll.u32 [#allocation5], 4
      %s27 = int_to_ptr.vmem [resolvable:$true] %s26
      %32 = dma.hbm_to_vmem [thread:$0]  %s1, 7168, %s27, [#allocation6], 896, 896, 56
    $region9: #{tpu_custom_call.1} parent=1 // pred_fallthru
      _
    // Predicated region
    $region10: #{tpu_custom_call.1} parent=1 // pred_check
      _
    $region11: #{tpu_custom_call.1} parent=1 // pred_check_branch
      %34 = sbr.rel (0) target = $region13
    $region12: #{tpu_custom_call.1} parent=1 // pred_region
      _
    $region13: #{tpu_custom_call.1} parent=1 // pred_fallthru
      _
    // Predicated region
    $region14: #{tpu_custom_call.1} parent=1 // pred_check
      _
    $region15: #{tpu_custom_call.1} parent=1 // pred_check_branch
      %36 = sbr.rel (0) target = $region17
    $region16: #{tpu_custom_call.1} parent=1 // pred_region
      %37 = dma.done [#allocation3], 16
    $region17: #{tpu_custom_call.1} parent=1 // pred_fallthru
      _
    // Predicated region
    $region18: #{tpu_custom_call.1} parent=1 // pred_check
      _
    $region19: #{tpu_custom_call.1} parent=1 // pred_check_branch
      %39 = sbr.rel (0) target = $region21
    $region20: #{tpu_custom_call.1} parent=1 // pred_region
      %40 = dma.done [#allocation6], 7168
    $region21: #{tpu_custom_call.1} parent=1 // pred_fallthru
      _
    %v42 = vld [vmem:[#allocation2] sm:$0x1]
    %v43 = vld [vmem:[#allocation5] sm:$0xff]
    %v44 = vld [vmem:[#allocation5 + $0x8] sm:$0xff]
    %v45 = vld [vmem:[#allocation5 + $0x10] sm:$0xff]
    %v46 = vld [vmem:[#allocation5 + $0x18] sm:$0xff]
    %v47 = vld [vmem:[#allocation5 + $0x20] sm:$0xff]
    %v48 = vld [vmem:[#allocation5 + $0x28] sm:$0xff]
    %v49 = vld [vmem:[#allocation5 + $0x30] sm:$0xff]
    %v50 = vld [vmem:[#allocation5 + $0x38] sm:$0xff]
    %v51 = vld [vmem:[#allocation5 + $0x40] sm:$0xff]
    %v52 = vld [vmem:[#allocation5 + $0x48] sm:$0xff]
    %v53 = vld [vmem:[#allocation5 + $0x50] sm:$0xff]
    %v54 = vld [vmem:[#allocation5 + $0x58] sm:$0xff]
    %v55 = vld [vmem:[#allocation5 + $0x60] sm:$0xff]
    %v56 = vld [vmem:[#allocation5 + $0x68] sm:$0xff]
    %v57 = vld [vmem:[#allocation5 + $0x70] sm:$0xff]
    %v58 = vld [vmem:[#allocation5 + $0x78] sm:$0xff]
    %v59 = vld [vmem:[#allocation5 + $0x80] sm:$0xff]
    %v60 = vld [vmem:[#allocation5 + $0x88] sm:$0xff]
    %v61 = vld [vmem:[#allocation5 + $0x90] sm:$0xff]
    %v62 = vld [vmem:[#allocation5 + $0x98] sm:$0xff]
    %v63 = vld [vmem:[#allocation5 + $0xa0] sm:$0xff]
    %v64 = vld [vmem:[#allocation5 + $0xa8] sm:$0xff]
    %v65 = vld [vmem:[#allocation5 + $0xb0] sm:$0xff]
    %v66 = vld [vmem:[#allocation5 + $0xb8] sm:$0xff]
    %v67 = vld [vmem:[#allocation5 + $0xc0] sm:$0xff]
    %v68 = vld [vmem:[#allocation5 + $0xc8] sm:$0xff]
    %v69 = vld [vmem:[#allocation5 + $0xd0] sm:$0xff]
    %v70 = vld [vmem:[#allocation5 + $0xd8] sm:$0xff]
    %v71 = vld [vmem:[#allocation5 + $0xe0] sm:$0xff]
    %v72 = vld [vmem:[#allocation5 + $0xe8] sm:$0xff]
    %v73 = vld [vmem:[#allocation5 + $0xf0] sm:$0xff]
    %v74 = vld [vmem:[#allocation5 + $0xf8] sm:$0xff]
    %v75 = vld [vmem:[#allocation5 + $0x100] sm:$0xff]
    %v76 = vld [vmem:[#allocation5 + $0x108] sm:$0xff]
    %v77 = vld [vmem:[#allocation5 + $0x110] sm:$0xff]
    %v78 = vld [vmem:[#allocation5 + $0x118] sm:$0xff]
    %v79 = vld [vmem:[#allocation5 + $0x120] sm:$0xff]
    %v80 = vld [vmem:[#allocation5 + $0x128] sm:$0xff]
    %v81 = vld [vmem:[#allocation5 + $0x130] sm:$0xff]
    %v82 = vld [vmem:[#allocation5 + $0x138] sm:$0xff]
    %v83 = vld [vmem:[#allocation5 + $0x140] sm:$0xff]
    %v84 = vld [vmem:[#allocation5 + $0x148] sm:$0xff]
    %v85 = vld [vmem:[#allocation5 + $0x150] sm:$0xff]
    %v86 = vld [vmem:[#allocation5 + $0x158] sm:$0xff]
    %v87 = vld [vmem:[#allocation5 + $0x160] sm:$0xff]
    %v88 = vld [vmem:[#allocation5 + $0x168] sm:$0xff]
    %v89 = vld [vmem:[#allocation5 + $0x170] sm:$0xff]
    %v90 = vld [vmem:[#allocation5 + $0x178] sm:$0xff]
    %v91 = vld [vmem:[#allocation5 + $0x180] sm:$0xff]
    %v92 = vld [vmem:[#allocation5 + $0x188] sm:$0xff]
    %v93 = vld [vmem:[#allocation5 + $0x190] sm:$0xff]
    %v94 = vld [vmem:[#allocation5 + $0x198] sm:$0xff]
    %v95 = vld [vmem:[#allocation5 + $0x1a0] sm:$0xff]
    %v96 = vld [vmem:[#allocation5 + $0x1a8] sm:$0xff]
    %v97 = vld [vmem:[#allocation5 + $0x1b0] sm:$0xff]
    %v98 = vld [vmem:[#allocation5 + $0x1b8] sm:$0xff]
    %v155 = vunpack.c.l.b16 %v43
    %v156 = vunpack.c.h.b16 %v43
    %v157 = vunpack.c.l.b16 %v44
    %v158 = vunpack.c.h.b16 %v44
    %v159 = vunpack.c.l.b16 %v45
    %v160 = vunpack.c.h.b16 %v45
    %v161 = vunpack.c.l.b16 %v46
    %v162 = vunpack.c.h.b16 %v46
    %v163 = vunpack.c.l.b16 %v47
    %v164 = vunpack.c.h.b16 %v47
    %v165 = vunpack.c.l.b16 %v48
    %v166 = vunpack.c.h.b16 %v48
    %v167 = vunpack.c.l.b16 %v49
    %v168 = vunpack.c.h.b16 %v49
    %v169 = vunpack.c.l.b16 %v50
    %v170 = vunpack.c.h.b16 %v50
    %v171 = vunpack.c.l.b16 %v51
    %v172 = vunpack.c.h.b16 %v51
    %v173 = vunpack.c.l.b16 %v52
    %v174 = vunpack.c.h.b16 %v52
    %v175 = vunpack.c.l.b16 %v53
    %v176 = vunpack.c.h.b16 %v53
    %v177 = vunpack.c.l.b16 %v54
    %v178 = vunpack.c.h.b16 %v54
    %v179 = vunpack.c.l.b16 %v55
    %v180 = vunpack.c.h.b16 %v55
    %v181 = vunpack.c.l.b16 %v56
    %v182 = vunpack.c.h.b16 %v56
    %v183 = vunpack.c.l.b16 %v57
    %v184 = vunpack.c.h.b16 %v57
    %v185 = vunpack.c.l.b16 %v58
    %v186 = vunpack.c.h.b16 %v58
    %v187 = vunpack.c.l.b16 %v59
    %v188 = vunpack.c.h.b16 %v59
    %v189 = vunpack.c.l.b16 %v60
    %v190 = vunpack.c.h.b16 %v60
    %v191 = vunpack.c.l.b16 %v61
    %v192 = vunpack.c.h.b16 %v61
    %v193 = vunpack.c.l.b16 %v62
    %v194 = vunpack.c.h.b16 %v62
    %v195 = vunpack.c.l.b16 %v63
    %v196 = vunpack.c.h.b16 %v63
    %v197 = vunpack.c.l.b16 %v64
    %v198 = vunpack.c.h.b16 %v64
    %v199 = vunpack.c.l.b16 %v65
    %v200 = vunpack.c.h.b16 %v65
    %v201 = vunpack.c.l.b16 %v66
    %v202 = vunpack.c.h.b16 %v66
    %v203 = vunpack.c.l.b16 %v67
    %v204 = vunpack.c.h.b16 %v67
    %v205 = vunpack.c.l.b16 %v68
    %v206 = vunpack.c.h.b16 %v68
    %v207 = vunpack.c.l.b16 %v69
    %v208 = vunpack.c.h.b16 %v69
    %v209 = vunpack.c.l.b16 %v70
    %v210 = vunpack.c.h.b16 %v70
    %v211 = vunpack.c.l.b16 %v71
    %v212 = vunpack.c.h.b16 %v71
    %v213 = vunpack.c.l.b16 %v72
    %v214 = vunpack.c.h.b16 %v72
    %v215 = vunpack.c.l.b16 %v73
    %v216 = vunpack.c.h.b16 %v73
    %v217 = vunpack.c.l.b16 %v74
    %v218 = vunpack.c.h.b16 %v74
    %v219 = vunpack.c.l.b16 %v75
    %v220 = vunpack.c.h.b16 %v75
    %v221 = vunpack.c.l.b16 %v76
    %v222 = vunpack.c.h.b16 %v76
    %v223 = vunpack.c.l.b16 %v77
    %v224 = vunpack.c.h.b16 %v77
    %v225 = vunpack.c.l.b16 %v78
    %v226 = vunpack.c.h.b16 %v78
    %v227 = vunpack.c.l.b16 %v79
    %v228 = vunpack.c.h.b16 %v79
    %v229 = vunpack.c.l.b16 %v80
    %v230 = vunpack.c.h.b16 %v80
    %v231 = vunpack.c.l.b16 %v81
    %v232 = vunpack.c.h.b16 %v81
    %v233 = vunpack.c.l.b16 %v82
    %v234 = vunpack.c.h.b16 %v82
    %v235 = vunpack.c.l.b16 %v83
    %v236 = vunpack.c.h.b16 %v83
    %v237 = vunpack.c.l.b16 %v84
    %v238 = vunpack.c.h.b16 %v84
    %v239 = vunpack.c.l.b16 %v85
    %v240 = vunpack.c.h.b16 %v85
    %v241 = vunpack.c.l.b16 %v86
    %v242 = vunpack.c.h.b16 %v86
    %v243 = vunpack.c.l.b16 %v87
    %v244 = vunpack.c.h.b16 %v87
    %v245 = vunpack.c.l.b16 %v88
    %v246 = vunpack.c.h.b16 %v88
    %v247 = vunpack.c.l.b16 %v89
    %v248 = vunpack.c.h.b16 %v89
    %v249 = vunpack.c.l.b16 %v90
    %v250 = vunpack.c.h.b16 %v90
    %v251 = vunpack.c.l.b16 %v91
    %v252 = vunpack.c.h.b16 %v91
    %v253 = vunpack.c.l.b16 %v92
    %v254 = vunpack.c.h.b16 %v92
    %v255 = vunpack.c.l.b16 %v93
    %v256 = vunpack.c.h.b16 %v93
    %v257 = vunpack.c.l.b16 %v94
    %v258 = vunpack.c.h.b16 %v94
    %v259 = vunpack.c.l.b16 %v95
    %v260 = vunpack.c.h.b16 %v95
    %v261 = vunpack.c.l.b16 %v96
    %v262 = vunpack.c.h.b16 %v96
    %v263 = vunpack.c.l.b16 %v97
    %v264 = vunpack.c.h.b16 %v97
    %v265 = vunpack.c.l.b16 %v98
    %v266 = vunpack.c.h.b16 %v98
    %v267 = vpack.c.b16 %v169, %v155
    %v268 = vpack.c.b16 %v170, %v156
    %v269 = vpack.c.b16 %v171, %v157
    %v270 = vpack.c.b16 %v172, %v158
    %v271 = vpack.c.b16 %v173, %v159
    %v272 = vpack.c.b16 %v174, %v160
    %v273 = vpack.c.b16 %v175, %v161
    %v274 = vpack.c.b16 %v176, %v162
    %v275 = vpack.c.b16 %v177, %v163
    %v276 = vpack.c.b16 %v178, %v164
    %v277 = vpack.c.b16 %v179, %v165
    %v278 = vpack.c.b16 %v180, %v166
    %v279 = vpack.c.b16 %v181, %v167
    %v280 = vpack.c.b16 %v182, %v168
    %v281 = vpack.c.b16 %v197, %v183
    %v282 = vpack.c.b16 %v198, %v184
    %v283 = vpack.c.b16 %v199, %v185
    %v284 = vpack.c.b16 %v200, %v186
    %v285 = vpack.c.b16 %v201, %v187
    %v286 = vpack.c.b16 %v202, %v188
    %v287 = vpack.c.b16 %v203, %v189
    %v288 = vpack.c.b16 %v204, %v190
    %v289 = vpack.c.b16 %v205, %v191
    %v290 = vpack.c.b16 %v206, %v192
    %v291 = vpack.c.b16 %v207, %v193
    %v292 = vpack.c.b16 %v208, %v194
    %v293 = vpack.c.b16 %v209, %v195
    %v294 = vpack.c.b16 %v210, %v196
    %v295 = vpack.c.b16 %v225, %v211
    %v296 = vpack.c.b16 %v226, %v212
    %v297 = vpack.c.b16 %v227, %v213
    %v298 = vpack.c.b16 %v228, %v214
    %v299 = vpack.c.b16 %v229, %v215
    %v300 = vpack.c.b16 %v230, %v216
    %v301 = vpack.c.b16 %v231, %v217
    %v302 = vpack.c.b16 %v232, %v218
    %v303 = vpack.c.b16 %v233, %v219
    %v304 = vpack.c.b16 %v234, %v220
    %v305 = vpack.c.b16 %v235, %v221
    %v306 = vpack.c.b16 %v236, %v222
    %v307 = vpack.c.b16 %v237, %v223
    %v308 = vpack.c.b16 %v238, %v224
    %v309 = vpack.c.b16 %v253, %v239
    %v310 = vpack.c.b16 %v254, %v240
    %v311 = vpack.c.b16 %v255, %v241
    %v312 = vpack.c.b16 %v256, %v242
    %v313 = vpack.c.b16 %v257, %v243
    %v314 = vpack.c.b16 %v258, %v244
    %v315 = vpack.c.b16 %v259, %v245
    %v316 = vpack.c.b16 %v260, %v246
    %v317 = vpack.c.b16 %v261, %v247
    %v318 = vpack.c.b16 %v262, %v248
    %v319 = vpack.c.b16 %v263, %v249
    %v320 = vpack.c.b16 %v264, %v250
    %v321 = vpack.c.b16 %v265, %v251
    %v322 = vpack.c.b16 %v266, %v252
    %vm379 = vcmask 523264
    %v381 = vsel %vm379, %v42, 0
    %383 = vmatprep.subr.bf16.mxu0 %v268
    %384 = vmatpush1.bf16.msra.mxu0 %v267
    %385 = vmatprep.subr.bf16.mxu0 %v282
    %386 = vmatpush1.bf16.msra.mxu0 %v281
    %387 = vmatprep.subr.bf16.mxu0 %v296
    %388 = vmatpush1.bf16.msra.mxu0 %v295
    %389 = vmatprep.subr.bf16.mxu0 %v310
    %390 = vmatpush1.bf16.msra.mxu0 %v309
    %391 = vmatprep.subr.bf16.mxu0 0
    %392 = vmatpush1.bf16.msra.mxu0 0
    %393 = vmatprep.subr.bf16.mxu0 0
    %394 = vmatpush1.bf16.msra.mxu0 0
    %395 = vmatprep.subr.bf16.mxu0 0
    %396 = vmatpush1.bf16.msra.mxu0 0
    %397 = vmatprep.subr.bf16.mxu0 0
    %398 = vmatpush1.bf16.msra.mxu0 0
    %399 = vmatprep.subr.bf16.mxu0 0
    %400 = vmatpush1.bf16.msra.mxu0 0
    %401 = vmatprep.subr.bf16.mxu0 0
    %402 = vmatpush1.bf16.msra.mxu0 0
    %403 = vmatprep.subr.bf16.mxu0 0
    %404 = vmatpush1.bf16.msra.mxu0 0
    %405 = vmatprep.subr.bf16.mxu0 0
    %406 = vmatpush1.bf16.msra.mxu0 0
    %407 = vmatprep.subr.bf16.mxu0 0
    %408 = vmatpush1.bf16.msra.mxu0 0
    %409 = vmatprep.subr.bf16.mxu0 0
    %410 = vmatpush1.bf16.msra.mxu0 0
    %411 = vmatprep.subr.bf16.mxu0 0
    %412 = vmatpush1.bf16.msra.mxu0 0
    %413 = vmatprep.subr.bf16.mxu0 0
    %414 = vmatpush1.bf16.msra.mxu0 0
    %415 = vmatprep.mubr.bf16.mxu0 0
    %416 = vmatmul.mubr.bf16.gmra.mrb[0].mxu0 %v381
    %v417 = vpop.f32.mrb[0].mxu0
    %v418 = vadd.f32 0.0, %v417
    %v419 = vpop.f32.mrb[0].mxu0
    %v420 = vadd.f32 0.0, %v419
    %v421 = vpop.f32.mrb[0].mxu0
    %v422 = vpop.f32.mrb[0].mxu0
    %423 = vdwg.mxu0
    %424 = vmatprep.subr.bf16.mxu0 %v270
    %425 = vmatpush1.bf16.msra.mxu0 %v269
    %426 = vmatprep.subr.bf16.mxu0 %v284
    %427 = vmatpush1.bf16.msra.mxu0 %v283
    %428 = vmatprep.subr.bf16.mxu0 %v298
    %429 = vmatpush1.bf16.msra.mxu0 %v297
    %430 = vmatprep.subr.bf16.mxu0 %v312
    %431 = vmatpush1.bf16.msra.mxu0 %v311
    %432 = vmatprep.subr.bf16.mxu0 0
    %433 = vmatpush1.bf16.msra.mxu0 0
    %434 = vmatprep.subr.bf16.mxu0 0
    %435 = vmatpush1.bf16.msra.mxu0 0
    %436 = vmatprep.subr.bf16.mxu0 0
    %437 = vmatpush1.bf16.msra.mxu0 0
    %438 = vmatprep.subr.bf16.mxu0 0
    %439 = vmatpush1.bf16.msra.mxu0 0
    %440 = vmatprep.subr.bf16.mxu0 0
    %441 = vmatpush1.bf16.msra.mxu0 0
    %442 = vmatprep.subr.bf16.mxu0 0
    %443 = vmatpush1.bf16.msra.mxu0 0
    %444 = vmatprep.subr.bf16.mxu0 0
    %445 = vmatpush1.bf16.msra.mxu0 0
    %446 = vmatprep.subr.bf16.mxu0 0
    %447 = vmatpush1.bf16.msra.mxu0 0
    %448 = vmatprep.subr.bf16.mxu0 0
    %449 = vmatpush1.bf16.msra.mxu0 0
    %450 = vmatprep.subr.bf16.mxu0 0
    %451 = vmatpush1.bf16.msra.mxu0 0
    %452 = vmatprep.subr.bf16.mxu0 0
    %453 = vmatpush1.bf16.msra.mxu0 0
    %454 = vmatprep.subr.bf16.mxu0 0
    %455 = vmatpush1.bf16.msra.mxu0 0
    %456 = vmatprep.mubr.bf16.mxu0 0
    %457 = vmatmul.mubr.bf16.gmra.mrb[0].mxu0 %v381
    %v458 = vpop.f32.mrb[0].mxu0
    %v459 = vadd.f32 0.0, %v458
    %v460 = vpop.f32.mrb[0].mxu0
    %v461 = vadd.f32 0.0, %v460
    %v462 = vpop.f32.mrb[0].mxu0
    %v463 = vpop.f32.mrb[0].mxu0
    %464 = vdwg.mxu0
    %465 = vmatprep.subr.bf16.mxu0 %v272
    %466 = vmatpush1.bf16.msra.mxu0 %v271
    %467 = vmatprep.subr.bf16.mxu0 %v286
    %468 = vmatpush1.bf16.msra.mxu0 %v285
    %469 = vmatprep.subr.bf16.mxu0 %v300
    %470 = vmatpush1.bf16.msra.mxu0 %v299
    %471 = vmatprep.subr.bf16.mxu0 %v314
    %472 = vmatpush1.bf16.msra.mxu0 %v313
    %473 = vmatprep.subr.bf16.mxu0 0
    %474 = vmatpush1.bf16.msra.mxu0 0
    %475 = vmatprep.subr.bf16.mxu0 0
    %476 = vmatpush1.bf16.msra.mxu0 0
    %477 = vmatprep.subr.bf16.mxu0 0
    %478 = vmatpush1.bf16.msra.mxu0 0
    %479 = vmatprep.subr.bf16.mxu0 0
    %480 = vmatpush1.bf16.msra.mxu0 0
    %481 = vmatprep.subr.bf16.mxu0 0
    %482 = vmatpush1.bf16.msra.mxu0 0
    %483 = vmatprep.subr.bf16.mxu0 0
    %484 = vmatpush1.bf16.msra.mxu0 0
    %485 = vmatprep.subr.bf16.mxu0 0
    %486 = vmatpush1.bf16.msra.mxu0 0
    %487 = vmatprep.subr.bf16.mxu0 0
    %488 = vmatpush1.bf16.msra.mxu0 0
    %489 = vmatprep.subr.bf16.mxu0 0
    %490 = vmatpush1.bf16.msra.mxu0 0
    %491 = vmatprep.subr.bf16.mxu0 0
    %492 = vmatpush1.bf16.msra.mxu0 0
    %493 = vmatprep.subr.bf16.mxu0 0
    %494 = vmatpush1.bf16.msra.mxu0 0
    %495 = vmatprep.subr.bf16.mxu0 0
    %496 = vmatpush1.bf16.msra.mxu0 0
    %497 = vmatprep.mubr.bf16.mxu0 0
    %498 = vmatmul.mubr.bf16.gmra.mrb[0].mxu0 %v381
    %v499 = vpop.f32.mrb[0].mxu0
    %v500 = vadd.f32 0.0, %v499
    %v501 = vpop.f32.mrb[0].mxu0
    %v502 = vadd.f32 0.0, %v501
    %v503 = vpop.f32.mrb[0].mxu0
    %v504 = vpop.f32.mrb[0].mxu0
    %505 = vdwg.mxu0
    %506 = vmatprep.subr.bf16.mxu0 %v274
    %507 = vmatpush1.bf16.msra.mxu0 %v273
    %508 = vmatprep.subr.bf16.mxu0 %v288
    %509 = vmatpush1.bf16.msra.mxu0 %v287
    %510 = vmatprep.subr.bf16.mxu0 %v302
    %511 = vmatpush1.bf16.msra.mxu0 %v301
    %512 = vmatprep.subr.bf16.mxu0 %v316
    %513 = vmatpush1.bf16.msra.mxu0 %v315
    %514 = vmatprep.subr.bf16.mxu0 0
    %515 = vmatpush1.bf16.msra.mxu0 0
    %516 = vmatprep.subr.bf16.mxu0 0
    %517 = vmatpush1.bf16.msra.mxu0 0
    %518 = vmatprep.subr.bf16.mxu0 0
    %519 = vmatpush1.bf16.msra.mxu0 0
    %520 = vmatprep.subr.bf16.mxu0 0
    %521 = vmatpush1.bf16.msra.mxu0 0
    %522 = vmatprep.subr.bf16.mxu0 0
    %523 = vmatpush1.bf16.msra.mxu0 0
    %524 = vmatprep.subr.bf16.mxu0 0
    %525 = vmatpush1.bf16.msra.mxu0 0
    %526 = vmatprep.subr.bf16.mxu0 0
    %527 = vmatpush1.bf16.msra.mxu0 0
    %528 = vmatprep.subr.bf16.mxu0 0
    %529 = vmatpush1.bf16.msra.mxu0 0
    %530 = vmatprep.subr.bf16.mxu0 0
    %531 = vmatpush1.bf16.msra.mxu0 0
    %532 = vmatprep.subr.bf16.mxu0 0
    %533 = vmatpush1.bf16.msra.mxu0 0
    %534 = vmatprep.subr.bf16.mxu0 0
    %535 = vmatpush1.bf16.msra.mxu0 0
    %536 = vmatprep.subr.bf16.mxu0 0
    %537 = vmatpush1.bf16.msra.mxu0 0
    %538 = vmatprep.mubr.bf16.mxu0 0
    %539 = vmatmul.mubr.bf16.gmra.mrb[0].mxu0 %v381
    %v540 = vpop.f32.mrb[0].mxu0
    %v541 = vadd.f32 0.0, %v540
    %v542 = vpop.f32.mrb[0].mxu0
    %v543 = vadd.f32 0.0, %v542
    %v544 = vpop.f32.mrb[0].mxu0
    %v545 = vpop.f32.mrb[0].mxu0
    %546 = vdwg.mxu0
    %547 = vmatprep.subr.bf16.mxu0 %v276
    %548 = vmatpush1.bf16.msra.mxu0 %v275
    %549 = vmatprep.subr.bf16.mxu0 %v290
    %550 = vmatpush1.bf16.msra.mxu0 %v289
    %551 = vmatprep.subr.bf16.mxu0 %v304
    %552 = vmatpush1.bf16.msra.mxu0 %v303
    %553 = vmatprep.subr.bf16.mxu0 %v318
    %554 = vmatpush1.bf16.msra.mxu0 %v317
    %555 = vmatprep.subr.bf16.mxu0 0
    %556 = vmatpush1.bf16.msra.mxu0 0
    %557 = vmatprep.subr.bf16.mxu0 0
    %558 = vmatpush1.bf16.msra.mxu0 0
    %559 = vmatprep.subr.bf16.mxu0 0
    %560 = vmatpush1.bf16.msra.mxu0 0
    %561 = vmatprep.subr.bf16.mxu0 0
    %562 = vmatpush1.bf16.msra.mxu0 0
    %563 = vmatprep.subr.bf16.mxu0 0
    %564 = vmatpush1.bf16.msra.mxu0 0
    %565 = vmatprep.subr.bf16.mxu0 0
    %566 = vmatpush1.bf16.msra.mxu0 0
    %567 = vmatprep.subr.bf16.mxu0 0
    %568 = vmatpush1.bf16.msra.mxu0 0
    %569 = vmatprep.subr.bf16.mxu0 0
    %570 = vmatpush1.bf16.msra.mxu0 0
    %571 = vmatprep.subr.bf16.mxu0 0
    %572 = vmatpush1.bf16.msra.mxu0 0
    %573 = vmatprep.subr.bf16.mxu0 0
    %574 = vmatpush1.bf16.msra.mxu0 0
    %575 = vmatprep.subr.bf16.mxu0 0
    %576 = vmatpush1.bf16.msra.mxu0 0
    %577 = vmatprep.subr.bf16.mxu0 0
    %578 = vmatpush1.bf16.msra.mxu0 0
    %579 = vmatprep.mubr.bf16.mxu0 0
    %580 = vmatmul.mubr.bf16.gmra.mrb[0].mxu0 %v381
    %v581 = vpop.f32.mrb[0].mxu0
    %v582 = vadd.f32 0.0, %v581
    %v583 = vpop.f32.mrb[0].mxu0
    %v584 = vadd.f32 0.0, %v583
    %v585 = vpop.f32.mrb[0].mxu0
    %v586 = vpop.f32.mrb[0].mxu0
    %587 = vdwg.mxu0
    %588 = vmatprep.subr.bf16.mxu0 %v278
    %589 = vmatpush1.bf16.msra.mxu0 %v277
    %590 = vmatprep.subr.bf16.mxu0 %v292
    %591 = vmatpush1.bf16.msra.mxu0 %v291
    %592 = vmatprep.subr.bf16.mxu0 %v306
    %593 = vmatpush1.bf16.msra.mxu0 %v305
    %594 = vmatprep.subr.bf16.mxu0 %v320
    %595 = vmatpush1.bf16.msra.mxu0 %v319
    %596 = vmatprep.subr.bf16.mxu0 0
    %597 = vmatpush1.bf16.msra.mxu0 0
    %598 = vmatprep.subr.bf16.mxu0 0
    %599 = vmatpush1.bf16.msra.mxu0 0
    %600 = vmatprep.subr.bf16.mxu0 0
    %601 = vmatpush1.bf16.msra.mxu0 0
    %602 = vmatprep.subr.bf16.mxu0 0
    %603 = vmatpush1.bf16.msra.mxu0 0
    %604 = vmatprep.subr.bf16.mxu0 0
    %605 = vmatpush1.bf16.msra.mxu0 0
    %606 = vmatprep.subr.bf16.mxu0 0
    %607 = vmatpush1.bf16.msra.mxu0 0
    %608 = vmatprep.subr.bf16.mxu0 0
    %609 = vmatpush1.bf16.msra.mxu0 0
    %610 = vmatprep.subr.bf16.mxu0 0
    %611 = vmatpush1.bf16.msra.mxu0 0
    %612 = vmatprep.subr.bf16.mxu0 0
    %613 = vmatpush1.bf16.msra.mxu0 0
    %614 = vmatprep.subr.bf16.mxu0 0
    %615 = vmatpush1.bf16.msra.mxu0 0
    %616 = vmatprep.subr.bf16.mxu0 0
    %617 = vmatpush1.bf16.msra.mxu0 0
    %618 = vmatprep.subr.bf16.mxu0 0
    %619 = vmatpush1.bf16.msra.mxu0 0
    %620 = vmatprep.mubr.bf16.mxu0 0
    %621 = vmatmul.mubr.bf16.gmra.mrb[0].mxu0 %v381
    %v622 = vpop.f32.mrb[0].mxu0
    %v623 = vadd.f32 0.0, %v622
    %v624 = vpop.f32.mrb[0].mxu0
    %v625 = vadd.f32 0.0, %v624
    %v626 = vpop.f32.mrb[0].mxu0
    %v627 = vpop.f32.mrb[0].mxu0
    %628 = vdwg.mxu0
    %629 = vmatprep.subr.bf16.mxu0 %v280
    %630 = vmatpush1.bf16.msra.mxu0 %v279
    %631 = vmatprep.subr.bf16.mxu0 %v294
    %632 = vmatpush1.bf16.msra.mxu0 %v293
    %633 = vmatprep.subr.bf16.mxu0 %v308
    %634 = vmatpush1.bf16.msra.mxu0 %v307
    %635 = vmatprep.subr.bf16.mxu0 %v322
    %636 = vmatpush1.bf16.msra.mxu0 %v321
    %637 = vmatprep.subr.bf16.mxu0 0
    %638 = vmatpush1.bf16.msra.mxu0 0
    %639 = vmatprep.subr.bf16.mxu0 0
    %640 = vmatpush1.bf16.msra.mxu0 0
    %641 = vmatprep.subr.bf16.mxu0 0
    %642 = vmatpush1.bf16.msra.mxu0 0
    %643 = vmatprep.subr.bf16.mxu0 0
    %644 = vmatpush1.bf16.msra.mxu0 0
    %645 = vmatprep.subr.bf16.mxu0 0
    %646 = vmatpush1.bf16.msra.mxu0 0
    %647 = vmatprep.subr.bf16.mxu0 0
    %648 = vmatpush1.bf16.msra.mxu0 0
    %649 = vmatprep.subr.bf16.mxu0 0
    %650 = vmatpush1.bf16.msra.mxu0 0
    %651 = vmatprep.subr.bf16.mxu0 0
    %652 = vmatpush1.bf16.msra.mxu0 0
    %653 = vmatprep.subr.bf16.mxu0 0
    %654 = vmatpush1.bf16.msra.mxu0 0
    %655 = vmatprep.subr.bf16.mxu0 0
    %656 = vmatpush1.bf16.msra.mxu0 0
    %657 = vmatprep.subr.bf16.mxu0 0
    %658 = vmatpush1.bf16.msra.mxu0 0
    %659 = vmatprep.subr.bf16.mxu0 0
    %660 = vmatpush1.bf16.msra.mxu0 0
    %661 = vmatprep.mubr.bf16.mxu0 0
    %662 = vmatmul.mubr.bf16.gmra.mrb[0].mxu0 %v381
    %v663 = vpop.f32.mrb[0].mxu0
    %v664 = vadd.f32 0.0, %v663
    %v665 = vpop.f32.mrb[0].mxu0
    %v666 = vadd.f32 0.0, %v665
    %v667 = vpop.f32.mrb[0].mxu0
    %v668 = vpop.f32.mrb[0].mxu0
    %669 = vdwg.mxu0
    %v670 = vmax.f32 %v418, %v420
    %v671 = vmax.f32 %v670, %v459
    %v672 = vmax.f32 %v671, %v461
    %v673 = vmax.f32 %v672, %v500
    %v674 = vmax.f32 %v673, %v502
    %v675 = vmax.f32 %v674, %v541
    %v676 = vmax.f32 %v675, %v543
    %v677 = vmax.f32 %v676, %v582
    %v678 = vmax.f32 %v677, %v584
    %v679 = vmax.f32 %v678, %v623
    %v680 = vmax.f32 %v679, %v625
    %v681 = vmax.f32 %v680, %v664
    %v682 = vmax.f32 %v681, %v666
    %v683 = vld [vmem:[%s2] sm:$0x1]
    %v685 = vlaneseq
    %v686 = vshrl.u32 %v685, 7
    %v687 = vsub.s32 0, %v686
    %v688 = vrot.slane %v683, %v687
    %v690 = vadd.f32 %v682, %v688
    %v691 = vmax.f32 %v690, 0.0
    %692 = vst [vmem:[#allocation7] sm:$0x3] %v691
    // Predicated region
    $region22: #{tpu_custom_call.1} parent=1 // pred_check
      _
    $region23: #{tpu_custom_call.1} parent=1 // pred_check_branch
      %694 = sbr.rel (0) target = $region25
    $region24: #{tpu_custom_call.1} parent=1 // pred_region
      %s696 = ssub.s32 32, 32
      %697 = vsyncadd [#allocation4], %s696
      %s699 = sshll.u32 [#allocation7], 4
      %s700 = int_to_ptr.vmem [resolvable:$true] %s699
      %702 = dma.vmem_to_hbm [thread:$0]  %s700, 32, %s3, [#allocation4]
    $region25: #{tpu_custom_call.1} parent=1 // pred_fallthru
      _
    // Predicated region
    $region26: #{tpu_custom_call.1} parent=1 // pred_check
      _
    $region27: #{tpu_custom_call.1} parent=1 // pred_check_branch
      %704 = sbr.rel (0) target = $region29
    $region28: #{tpu_custom_call.1} parent=1 // pred_region
      %705 = dma.done [#allocation4], 32
    $region29: #{tpu_custom_call.1} parent=1 // pred_fallthru
      _
    %706 = vsyncpa [#allocation3], 1
    %707 = vsyncpa [#allocation6], 1
    %708 = vsyncpa [#allocation4], 1

</llo_original>
